<compile_context>
chip_gen: v7x
topology: tpu7x:2x2x1
jax: 0.10.0
libtpu: 0.0.40
codegen_flags: <defaults>
</compile_context>

<pallas_src>
import functools

import jax
import jax.numpy as jnp
from jax.experimental import pallas as pl
from jax.experimental.pallas import tpu as pltpu

_TETRA_PERMS_PY = (
    (0, 1, 2, 3), (0, 2, 3, 1), (0, 3, 1, 2),
    (1, 0, 3, 2), (1, 2, 0, 3), (1, 3, 2, 0),
    (2, 0, 1, 3), (2, 1, 3, 0), (2, 3, 0, 1),
    (3, 0, 2, 1), (3, 1, 0, 2), (3, 2, 1, 0),
)
TETRA_PERMS = jnp.array(_TETRA_PERMS_PY, dtype=jnp.int32)
BN_EPS = 1e-5


def _round_up(a, b):
    return (a + b - 1) // b * b


def _tetra_kernel(x_ref, wcat_ref, w2t_ref, w3t_ref, bias_ref, o_ref):
    # x_ref:    (4, tn, Hp)   neighbor-major tile of x
    # wcat_ref: (Hp, 4*Hp)    column block k = W_bs slot-k weight, transposed
    # w2t_ref:  (Hp, Hp)      second Linear (BN folded in), transposed
    # w3t_ref:  (Hp, Hp)      third Linear, transposed
    # bias_ref: (3, Hp)       rows: [b1, b2_folded, b3]
    # o_ref:    (tn, Hp)
    _, tn, hp = x_ref.shape

    # One big MXU matmul: all 16 (neighbor j, slot k) partials at once.
    x2 = x_ref[...].reshape(4 * tn, hp)                                   # (4tn, Hp)
    p_big = jnp.dot(x2, wcat_ref[...], preferred_element_type=jnp.float32)  # (4tn, 4Hp)

    b1 = bias_ref[0:1, :]                                                 # (1, Hp)
    # part[j][k] = x_j @ W_k^T  (tile-aligned static slices: tn % 8 == 0, Hp % 128 == 0)
    part = [[p_big[j * tn:(j + 1) * tn, k * hp:(k + 1) * hp] for k in range(4)]
            for j in range(4)]
    # Slot 0 appears exactly once per permutation -> fold b1 into the slot-0 partials.
    part0 = [part[j][0] + b1 for j in range(4)]

    # nei_messages_sum = sum over the 12 permutations of relu(sum of 4 partials) / 3.
    s = None
    for (a, b, c, d) in _TETRA_PERMS_PY:
        row = jnp.maximum(part0[a] + part[b][1] + part[c][2] + part[d][3], 0.0)
        s = row if s is None else s + row
    s = s * (1.0 / 3.0)                                                   # (tn, Hp)

    # mlp_out: Linear -> (folded BatchNorm) -> ReLU -> Linear
    y = jnp.dot(s, w2t_ref[...], preferred_element_type=jnp.float32) + bias_ref[1:2, :]
    y = jnp.maximum(y, 0.0)
    out = jnp.dot(y, w3t_ref[...], preferred_element_type=jnp.float32) + bias_ref[2:3, :]

    o_ref[...] = out.astype(o_ref.dtype)


@functools.partial(jax.jit, static_argnames=("tn",))
def concat_tetra_permuter(x, params, *, tn=128):
    """x: [N, 4, H] float32.  Returns [N, H] float32 (eval-mode forward)."""
    N, four, H = x.shape
    assert four == 4

    Hp = _round_up(H, 128)                      # lane-dense hidden dim
    tn_eff = min(tn, _round_up(N, 8))           # shrink tile for small N (still % 8 == 0)
    N_pad = _round_up(N, tn_eff)                # ragged N handled via zero padding

    # ---- trace-time parameter prep -------------------------------------------------
    # Fold eval-mode BatchNorm into the second Linear.
    scale = params["gamma"] * jax.lax.rsqrt(params["var"] + BN_EPS)       # (H,)
    w2t_f = params["w2"].T * scale[None, :]                               # (H, H)
    b2_f = (params["b2"] - params["mean"]) * scale + params["beta"]       # (H,)

    pad2 = lambda w: jnp.pad(w, ((0, Hp - H), (0, Hp - H)))
    pad1 = lambda v: jnp.pad(v, ((0, Hp - H),))

    # W_bs weight (H, 4H) -> per-slot transposed blocks, padded, concatenated on columns.
    w1 = params["w1"]
    w_cat = jnp.concatenate(
        [pad2(w1[:, k * H:(k + 1) * H].T) for k in range(4)], axis=1)     # (Hp, 4Hp)
    w2t_p = pad2(w2t_f)                                                   # (Hp, Hp)
    w3t_p = pad2(params["w3"].T)                                          # (Hp, Hp)
    bias_pack = jnp.stack([pad1(params["b1"]), pad1(b2_f), pad1(params["b3"])])  # (3, Hp)

    # x: [N,4,H] -> zero-padded, neighbor-major [4, N_pad, Hp]
    xt = jnp.pad(x, ((0, N_pad - N), (0, 0), (0, Hp - H))).transpose(1, 0, 2)

    full = lambda a: pl.BlockSpec(a.shape, lambda i, nd=a.ndim: (0,) * nd)

    out = pl.pallas_call(
        _tetra_kernel,
        out_shape=jax.ShapeDtypeStruct((N_pad, Hp), jnp.float32),
        grid=(N_pad // tn_eff,),
        in_specs=[
            pl.BlockSpec((4, tn_eff, Hp), lambda i: (0, i, 0)),           # x tile over N
            full(w_cat), full(w2t_p), full(w3t_p), full(bias_pack),
        ],
        out_specs=pl.BlockSpec((tn_eff, Hp), lambda i: (i, 0)),
        compiler_params=pltpu.CompilerParams(
            dimension_semantics=("parallel",),
            vmem_limit_bytes=64 * 1024 * 1024,
        ),
    )(xt, w_cat, w2t_p, w3t_p, bias_pack)

    return out[:N, :H]


def init_params(key, hidden):
    ks = jax.random.split(key, 8)
    # W_bs: xavier_normal_(gain=1) -> std = sqrt(2 / (fan_in + fan_out))
    std_bs = (2.0 / (4 * hidden + hidden)) ** 0.5
    w1 = std_bs * jax.random.normal(ks[0], (hidden, 4 * hidden), jnp.float32)
    b1 = 0.01 * jax.random.normal(ks[1], (hidden,), jnp.float32)
    std = (1.0 / hidden) ** 0.5
    w2 = std * jax.random.normal(ks[2], (hidden, hidden), jnp.float32)
    b2 = 0.01 * jax.random.normal(ks[3], (hidden,), jnp.float32)
    w3 = std * jax.random.normal(ks[4], (hidden, hidden), jnp.float32)
    b3 = 0.01 * jax.random.normal(ks[5], (hidden,), jnp.float32)
    gamma = 1.0 + 0.1 * jax.random.normal(ks[6], (hidden,), jnp.float32)
    beta = 0.1 * jax.random.normal(ks[7], (hidden,), jnp.float32)
    mean = jnp.zeros((hidden,), jnp.float32)
    var = jnp.ones((hidden,), jnp.float32)
    return dict(w1=w1, b1=b1, w2=w2, b2=b2, w3=w3, b3=b3,
                gamma=gamma, beta=beta, mean=mean, var=var)


def reference(x, params):
    """Pure-JAX reference mirroring the PyTorch forward (eval mode)."""
    N, _, H = x.shape
    xc = x[:, TETRA_PERMS, :].reshape(N, 12, 4 * H)
    h = jax.nn.relu(jnp.einsum("npk,hk->nph", xc, params["w1"]) + params["b1"])
    s = h.sum(axis=1) / 3.0
    y1 = s @ params["w2"].T + params["b2"]
    bn = params["gamma"] * (y1 - params["mean"]) / jnp.sqrt(params["var"] + BN_EPS) \
         + params["beta"]
    return jax.nn.relu(bn) @ params["w3"].T + params["b3"]


if __name__ == "__main__":
    key = jax.random.PRNGKey(0)
    kx, kp = jax.random.split(key)

    N, hidden = 16, 32                          # x: [N, 4, hidden]
    x = jax.random.normal(kx, (N, 4, hidden), jnp.float32)
    params = init_params(kp, hidden)

    out = concat_tetra_permuter(x, params)
    out = jax.block_until_ready(out)

    ref = reference(x, params)
    assert out.shape == (N, hidden)
    assert jnp.allclose(out, ref, rtol=1e-5, atol=1e-4), \
        f"max err {jnp.max(jnp.abs(out - ref))}"

    # Ragged / N==1 path (the PyTorch repeat_interleave special case) via padding.
    x1 = x[:1]
    out1 = jax.block_until_ready(concat_tetra_permuter(x1, params))
    ref1 = reference(x1, params)
    assert out1.shape == (1, hidden)
    assert jnp.allclose(out1, ref1, rtol=1e-5, atol=1e-4), \
        f"max err (N=1) {jnp.max(jnp.abs(out1 - ref1))}"

    print("KERNEL_OK")
</pallas_src>

<mosaic_0001>
module attributes {stable_mosaic.version = 11 : i64} {
  func.func @_tetra_kernel(%arg0: i32, %arg1: memref<4x16x128xf32, #tpu.memory_space<vmem>>, %arg2: memref<128x512xf32, #tpu.memory_space<vmem>>, %arg3: memref<128x128xf32, #tpu.memory_space<vmem>>, %arg4: memref<128x128xf32, #tpu.memory_space<vmem>>, %arg5: memref<3x128xf32, #tpu.memory_space<vmem>>, %arg6: memref<16x128xf32, #tpu.memory_space<vmem>>) attributes {dimension_semantics = [#tpu.dimension_semantics<parallel>], iteration_bounds = array<i64: 1>, scalar_prefetch = 0 : i64, scratch_operands = 0 : i64, tpu.core_type = #tpu.core_type<tc>, window_params = [{transform_indices = @transform_0, window_bounds = array<i64: 4, 16, 128>}, {pipeline_mode = #tpu.pipeline_mode<synchronous>, transform_indices = @transform_1, window_bounds = array<i64: 128, 512>}, {pipeline_mode = #tpu.pipeline_mode<synchronous>, transform_indices = @transform_2, window_bounds = array<i64: 128, 128>}, {pipeline_mode = #tpu.pipeline_mode<synchronous>, transform_indices = @transform_3, window_bounds = array<i64: 128, 128>}, {pipeline_mode = #tpu.pipeline_mode<synchronous>, transform_indices = @transform_4, window_bounds = array<i64: 3, 128>}, {transform_indices = @transform_5, window_bounds = array<i64: 16, 128>}]} {
    %c0 = arith.constant 0 : index
    %c0_0 = arith.constant 0 : index
    %c0_1 = arith.constant 0 : index
    %0 = vector.load %arg1[%c0, %c0_0, %c0_1] : memref<4x16x128xf32, #tpu.memory_space<vmem>>, vector<4x16x128xf32>
    %1 = vector.shape_cast %0 : vector<4x16x128xf32> to vector<64x128xf32>
    %c0_2 = arith.constant 0 : index
    %c0_3 = arith.constant 0 : index
    %2 = vector.load %arg2[%c0_2, %c0_3] : memref<128x512xf32, #tpu.memory_space<vmem>>, vector<128x512xf32>
    %cst = arith.constant dense<0.000000e+00> : vector<64x512xf32>
    %3 = tpu.matmul %1, %2, %cst {dimension_numbers = #tpu.dot_dimension_numbers<[1], [0], [0], [1], [0, 0, 1, 1], [], []>} : vector<64x128xf32>, vector<128x512xf32>, vector<64x512xf32> -> vector<64x512xf32>
    %c0_4 = arith.constant 0 : index
    %c0_5 = arith.constant 0 : index
    %4 = vector.load %arg5[%c0_4, %c0_5] : memref<3x128xf32, #tpu.memory_space<vmem>>, vector<1x128xf32>
    %5 = vector.extract_strided_slice %3 {offsets = [0, 0], sizes = [16, 128], strides = [1, 1]} : vector<64x512xf32> to vector<16x128xf32>
    %6 = vector.extract_strided_slice %3 {offsets = [0, 128], sizes = [16, 128], strides = [1, 1]} : vector<64x512xf32> to vector<16x128xf32>
    %7 = vector.extract_strided_slice %3 {offsets = [0, 256], sizes = [16, 128], strides = [1, 1]} : vector<64x512xf32> to vector<16x128xf32>
    %8 = vector.extract_strided_slice %3 {offsets = [0, 384], sizes = [16, 128], strides = [1, 1]} : vector<64x512xf32> to vector<16x128xf32>
    %9 = vector.extract_strided_slice %3 {offsets = [16, 0], sizes = [16, 128], strides = [1, 1]} : vector<64x512xf32> to vector<16x128xf32>
    %10 = vector.extract_strided_slice %3 {offsets = [16, 128], sizes = [16, 128], strides = [1, 1]} : vector<64x512xf32> to vector<16x128xf32>
    %11 = vector.extract_strided_slice %3 {offsets = [16, 256], sizes = [16, 128], strides = [1, 1]} : vector<64x512xf32> to vector<16x128xf32>
    %12 = vector.extract_strided_slice %3 {offsets = [16, 384], sizes = [16, 128], strides = [1, 1]} : vector<64x512xf32> to vector<16x128xf32>
    %13 = vector.extract_strided_slice %3 {offsets = [32, 0], sizes = [16, 128], strides = [1, 1]} : vector<64x512xf32> to vector<16x128xf32>
    %14 = vector.extract_strided_slice %3 {offsets = [32, 128], sizes = [16, 128], strides = [1, 1]} : vector<64x512xf32> to vector<16x128xf32>
    %15 = vector.extract_strided_slice %3 {offsets = [32, 256], sizes = [16, 128], strides = [1, 1]} : vector<64x512xf32> to vector<16x128xf32>
    %16 = vector.extract_strided_slice %3 {offsets = [32, 384], sizes = [16, 128], strides = [1, 1]} : vector<64x512xf32> to vector<16x128xf32>
    %17 = vector.extract_strided_slice %3 {offsets = [48, 0], sizes = [16, 128], strides = [1, 1]} : vector<64x512xf32> to vector<16x128xf32>
    %18 = vector.extract_strided_slice %3 {offsets = [48, 128], sizes = [16, 128], strides = [1, 1]} : vector<64x512xf32> to vector<16x128xf32>
    %19 = vector.extract_strided_slice %3 {offsets = [48, 256], sizes = [16, 128], strides = [1, 1]} : vector<64x512xf32> to vector<16x128xf32>
    %20 = vector.extract_strided_slice %3 {offsets = [48, 384], sizes = [16, 128], strides = [1, 1]} : vector<64x512xf32> to vector<16x128xf32>
    %21 = vector.broadcast %4 : vector<1x128xf32> to vector<16x128xf32>
    %22 = arith.addf %5, %21 : vector<16x128xf32>
    %23 = vector.broadcast %4 : vector<1x128xf32> to vector<16x128xf32>
    %24 = arith.addf %9, %23 : vector<16x128xf32>
    %25 = vector.broadcast %4 : vector<1x128xf32> to vector<16x128xf32>
    %26 = arith.addf %13, %25 : vector<16x128xf32>
    %27 = vector.broadcast %4 : vector<1x128xf32> to vector<16x128xf32>
    %28 = arith.addf %17, %27 : vector<16x128xf32>
    %29 = arith.addf %22, %10 : vector<16x128xf32>
    %30 = arith.addf %29, %15 : vector<16x128xf32>
    %31 = arith.addf %30, %20 : vector<16x128xf32>
    %cst_6 = arith.constant 0.000000e+00 : f32
    %32 = vector.broadcast %cst_6 : f32 to vector<16x128xf32>
    %33 = arith.maximumf %31, %32 : vector<16x128xf32>
    %34 = arith.addf %22, %14 : vector<16x128xf32>
    %35 = arith.addf %34, %19 : vector<16x128xf32>
    %36 = arith.addf %35, %12 : vector<16x128xf32>
    %cst_7 = arith.constant 0.000000e+00 : f32
    %37 = vector.broadcast %cst_7 : f32 to vector<16x128xf32>
    %38 = arith.maximumf %36, %37 : vector<16x128xf32>
    %39 = arith.addf %33, %38 : vector<16x128xf32>
    %40 = arith.addf %22, %18 : vector<16x128xf32>
    %41 = arith.addf %40, %11 : vector<16x128xf32>
    %42 = arith.addf %41, %16 : vector<16x128xf32>
    %cst_8 = arith.constant 0.000000e+00 : f32
    %43 = vector.broadcast %cst_8 : f32 to vector<16x128xf32>
    %44 = arith.maximumf %42, %43 : vector<16x128xf32>
    %45 = arith.addf %39, %44 : vector<16x128xf32>
    %46 = arith.addf %24, %6 : vector<16x128xf32>
    %47 = arith.addf %46, %19 : vector<16x128xf32>
    %48 = arith.addf %47, %16 : vector<16x128xf32>
    %cst_9 = arith.constant 0.000000e+00 : f32
    %49 = vector.broadcast %cst_9 : f32 to vector<16x128xf32>
    %50 = arith.maximumf %48, %49 : vector<16x128xf32>
    %51 = arith.addf %45, %50 : vector<16x128xf32>
    %52 = arith.addf %24, %14 : vector<16x128xf32>
    %53 = arith.addf %52, %7 : vector<16x128xf32>
    %54 = arith.addf %53, %20 : vector<16x128xf32>
    %cst_10 = arith.constant 0.000000e+00 : f32
    %55 = vector.broadcast %cst_10 : f32 to vector<16x128xf32>
    %56 = arith.maximumf %54, %55 : vector<16x128xf32>
    %57 = arith.addf %51, %56 : vector<16x128xf32>
    %58 = arith.addf %24, %18 : vector<16x128xf32>
    %59 = arith.addf %58, %15 : vector<16x128xf32>
    %60 = arith.addf %59, %8 : vector<16x128xf32>
    %cst_11 = arith.constant 0.000000e+00 : f32
    %61 = vector.broadcast %cst_11 : f32 to vector<16x128xf32>
    %62 = arith.maximumf %60, %61 : vector<16x128xf32>
    %63 = arith.addf %57, %62 : vector<16x128xf32>
    %64 = arith.addf %26, %6 : vector<16x128xf32>
    %65 = arith.addf %64, %11 : vector<16x128xf32>
    %66 = arith.addf %65, %20 : vector<16x128xf32>
    %cst_12 = arith.constant 0.000000e+00 : f32
    %67 = vector.broadcast %cst_12 : f32 to vector<16x128xf32>
    %68 = arith.maximumf %66, %67 : vector<16x128xf32>
    %69 = arith.addf %63, %68 : vector<16x128xf32>
    %70 = arith.addf %26, %10 : vector<16x128xf32>
    %71 = arith.addf %70, %19 : vector<16x128xf32>
    %72 = arith.addf %71, %8 : vector<16x128xf32>
    %cst_13 = arith.constant 0.000000e+00 : f32
    %73 = vector.broadcast %cst_13 : f32 to vector<16x128xf32>
    %74 = arith.maximumf %72, %73 : vector<16x128xf32>
    %75 = arith.addf %69, %74 : vector<16x128xf32>
    %76 = arith.addf %26, %18 : vector<16x128xf32>
    %77 = arith.addf %76, %7 : vector<16x128xf32>
    %78 = arith.addf %77, %12 : vector<16x128xf32>
    %cst_14 = arith.constant 0.000000e+00 : f32
    %79 = vector.broadcast %cst_14 : f32 to vector<16x128xf32>
    %80 = arith.maximumf %78, %79 : vector<16x128xf32>
    %81 = arith.addf %75, %80 : vector<16x128xf32>
    %82 = arith.addf %28, %6 : vector<16x128xf32>
    %83 = arith.addf %82, %15 : vector<16x128xf32>
    %84 = arith.addf %83, %12 : vector<16x128xf32>
    %cst_15 = arith.constant 0.000000e+00 : f32
    %85 = vector.broadcast %cst_15 : f32 to vector<16x128xf32>
    %86 = arith.maximumf %84, %85 : vector<16x128xf32>
    %87 = arith.addf %81, %86 : vector<16x128xf32>
    %88 = arith.addf %28, %10 : vector<16x128xf32>
    %89 = arith.addf %88, %7 : vector<16x128xf32>
    %90 = arith.addf %89, %16 : vector<16x128xf32>
    %cst_16 = arith.constant 0.000000e+00 : f32
    %91 = vector.broadcast %cst_16 : f32 to vector<16x128xf32>
    %92 = arith.maximumf %90, %91 : vector<16x128xf32>
    %93 = arith.addf %87, %92 : vector<16x128xf32>
    %94 = arith.addf %28, %14 : vector<16x128xf32>
    %95 = arith.addf %94, %11 : vector<16x128xf32>
    %96 = arith.addf %95, %8 : vector<16x128xf32>
    %cst_17 = arith.constant 0.000000e+00 : f32
    %97 = vector.broadcast %cst_17 : f32 to vector<16x128xf32>
    %98 = arith.maximumf %96, %97 : vector<16x128xf32>
    %99 = arith.addf %93, %98 : vector<16x128xf32>
    %cst_18 = arith.constant 0.333333343 : f32
    %100 = vector.broadcast %cst_18 : f32 to vector<16x128xf32>
    %101 = arith.mulf %99, %100 : vector<16x128xf32>
    %c0_19 = arith.constant 0 : index
    %c0_20 = arith.constant 0 : index
    %102 = vector.load %arg3[%c0_19, %c0_20] : memref<128x128xf32, #tpu.memory_space<vmem>>, vector<128x128xf32>
    %cst_21 = arith.constant dense<0.000000e+00> : vector<16x128xf32>
    %103 = tpu.matmul %101, %102, %cst_21 {dimension_numbers = #tpu.dot_dimension_numbers<[1], [0], [0], [1], [0, 0, 1, 1], [], []>} : vector<16x128xf32>, vector<128x128xf32>, vector<16x128xf32> -> vector<16x128xf32>
    %c1 = arith.constant 1 : index
    %c0_22 = arith.constant 0 : index
    %104 = vector.load %arg5[%c1, %c0_22] : memref<3x128xf32, #tpu.memory_space<vmem>>, vector<1x128xf32>
    %105 = vector.broadcast %104 : vector<1x128xf32> to vector<16x128xf32>
    %106 = arith.addf %103, %105 : vector<16x128xf32>
    %cst_23 = arith.constant 0.000000e+00 : f32
    %107 = vector.broadcast %cst_23 : f32 to vector<16x128xf32>
    %108 = arith.maximumf %106, %107 : vector<16x128xf32>
    %c0_24 = arith.constant 0 : index
    %c0_25 = arith.constant 0 : index
    %109 = vector.load %arg4[%c0_24, %c0_25] : memref<128x128xf32, #tpu.memory_space<vmem>>, vector<128x128xf32>
    %cst_26 = arith.constant dense<0.000000e+00> : vector<16x128xf32>
    %110 = tpu.matmul %108, %109, %cst_26 {dimension_numbers = #tpu.dot_dimension_numbers<[1], [0], [0], [1], [0, 0, 1, 1], [], []>} : vector<16x128xf32>, vector<128x128xf32>, vector<16x128xf32> -> vector<16x128xf32>
    %c2 = arith.constant 2 : index
    %c0_27 = arith.constant 0 : index
    %111 = vector.load %arg5[%c2, %c0_27] : memref<3x128xf32, #tpu.memory_space<vmem>>, vector<1x128xf32>
    %112 = vector.broadcast %111 : vector<1x128xf32> to vector<16x128xf32>
    %113 = arith.addf %110, %112 : vector<16x128xf32>
    %c0_28 = arith.constant 0 : index
    %c0_29 = arith.constant 0 : index
    %114 = vector.load %arg6[%c0_28, %c0_29] : memref<16x128xf32, #tpu.memory_space<vmem>>, vector<16x128xf32>
    tpu.vector_store %arg6[%c0_28, %c0_29], %113 {strides = array<i32>} : memref<16x128xf32, #tpu.memory_space<vmem>>, vector<16x128xf32>,
    return
  }
  func.func @transform_0(%arg0: i32) -> (i32, i32, i32) {
    %c0_i32 = arith.constant 0 : i32
    %c0_i32_0 = arith.constant 0 : i32
    %c0_i32_1 = arith.constant 0 : i32
    return %c0_i32, %arg0, %c0_i32_0 : i32, i32, i32
  }
  func.func @transform_1(%arg0: i32) -> (i32, i32) {
    %c0_i32 = arith.constant 0 : i32
    %c0_i32_0 = arith.constant 0 : i32
    %c0_i32_1 = arith.constant 0 : i32
    return %c0_i32, %c0_i32_0 : i32, i32
  }
  func.func @transform_2(%arg0: i32) -> (i32, i32) {
    %c0_i32 = arith.constant 0 : i32
    %c0_i32_0 = arith.constant 0 : i32
    %c0_i32_1 = arith.constant 0 : i32
    return %c0_i32, %c0_i32_0 : i32, i32
  }
  func.func @transform_3(%arg0: i32) -> (i32, i32) {
    %c0_i32 = arith.constant 0 : i32
    %c0_i32_0 = arith.constant 0 : i32
    %c0_i32_1 = arith.constant 0 : i32
    return %c0_i32, %c0_i32_0 : i32, i32
  }
  func.func @transform_4(%arg0: i32) -> (i32, i32) {
    %c0_i32 = arith.constant 0 : i32
    %c0_i32_0 = arith.constant 0 : i32
    %c0_i32_1 = arith.constant 0 : i32
    return %c0_i32, %c0_i32_0 : i32, i32
  }
  func.func @transform_5(%arg0: i32) -> (i32, i32) {
    %c0_i32 = arith.constant 0 : i32
    %c0_i32_0 = arith.constant 0 : i32
    return %arg0, %c0_i32 : i32, i32
  }
}

</mosaic_0001>

<llo_original>
// kernel: concat_tetra_permuter.1
$region0: #{concat_tetra_permuter.1}
  #allocation0 [shape = 'u32[]', space=smem, size = 0x4, offset = 0x4, fixed_abs, tag = 'smem constant byte address 0x4 - core index']
  #allocation1 [shape = 'u32[144,128]{1,0:T(1,128)}', space=vmem, size = 0x12000, scoped, tag = 'internal scratch']
  %s0 = inlined_call_operand.hbm [shape: f32[4,16,128], index: 0, kind: input, shape index: {}]
  %s1 = inlined_call_operand.hbm [shape: f32[128,512], index: 1, kind: input, shape index: {}]
  %s2 = inlined_call_operand.hbm [shape: f32[128,128], index: 2, kind: input, shape index: {}]
  %s3 = inlined_call_operand.hbm [shape: f32[128,128], index: 3, kind: input, shape index: {}]
  %s4 = inlined_call_operand.hbm [shape: f32[3,128], index: 4, kind: input, shape index: {}]
  %s5 = inlined_call_operand.hbm [shape: f32[16,128], index: 5, kind: output, shape index: {}]
  %s6 = sld [smem:[#allocation0]]
  $region50: #{concat_tetra_permuter.1} parent=0
    _
  %s8 = ssub.s32 1, %s6
  %s9 = scalar_select 0, %s8, %s6
  $region1: #{concat_tetra_permuter.1} parent=0
    #allocation2 [shape = 'u8[32768]{0}', space=vmem, size = 0x8000, scoped, tag = 'input window, operand 0, single buffered']
    #allocation3 [shape = 's32[1]{0}', space=sflag, size = 0x4, scoped, tag = 'scoped memory for concat_tetra_permuter.1']
    #allocation4 [shape = 's32[1]{0}', space=sflag, size = 0x4, scoped, tag = 'scoped memory for concat_tetra_permuter.1']
    #allocation5 [shape = 'u8[262144]{0}', space=vmem, size = 0x40000, scoped, tag = 'input window, operand 1, single buffered']
    #allocation6 [shape = 's32[1]{0}', space=sflag, size = 0x4, scoped, tag = 'scoped memory for concat_tetra_permuter.1']
    #allocation7 [shape = 'u8[65536]{0}', space=vmem, size = 0x10000, scoped, tag = 'input window, operand 2, single buffered']
    #allocation8 [shape = 'u8[65536]{0}', space=vmem, size = 0x10000, scoped, tag = 'input window, operand 3, single buffered']
    #allocation9 [shape = 's32[1]{0}', space=sflag, size = 0x4, scoped, tag = 'scoped memory for concat_tetra_permuter.1']
    #allocation10 [shape = 'u8[2048]{0}', space=vmem, size = 0x800, scoped, tag = 'input window, operand 4, single buffered']
    #allocation11 [shape = 'u8[8192]{0}', space=vmem, size = 0x2000, scoped, tag = 'output window, operand 0, single buffered']
    %10 = vsyncpa [#allocation3], 0
    %11 = vsyncpa [#allocation6], 0
    %12 = vsyncpa [#allocation9], 0
    %13 = vsyncpa [#allocation4], 0
    // Predicated region
    $region2: #{concat_tetra_permuter.1} parent=1 // pred_check
      _
    $region3: #{concat_tetra_permuter.1} parent=1 // pred_check_branch
      %15 = sbr.rel (0) target = $region5
    $region4: #{concat_tetra_permuter.1} parent=1 // pred_region
      %s17 = ssub.s32 1024, 1024
      %18 = vsyncadd [#allocation3], %s17
      %s19 = sshll.u32 [#allocation2], 4
      %s20 = int_to_ptr.vmem [resolvable:$true] %s19
      %25 = dma.hbm_to_vmem [thread:$0]  %s0, 1024, %s20, [#allocation3], 128, 128, 8
    $region5: #{concat_tetra_permuter.1} parent=1 // pred_fallthru
      _
    // Predicated region
    $region6: #{concat_tetra_permuter.1} parent=1 // pred_check
      _
    $region7: #{concat_tetra_permuter.1} parent=1 // pred_check_branch
      %27 = sbr.rel (0) target = $region9
    $region8: #{concat_tetra_permuter.1} parent=1 // pred_region
      %s29 = ssub.s32 8192, 8192
      %30 = vsyncadd [#allocation6], %s29
      %s31 = sshll.u32 [#allocation5], 4
      %s32 = int_to_ptr.vmem [resolvable:$true] %s31
      %37 = dma.hbm_to_vmem [thread:$0]  %s1, 8192, %s32, [#allocation6], 512, 512, 32
    $region9: #{concat_tetra_permuter.1} parent=1 // pred_fallthru
      _
    // Predicated region
    $region10: #{concat_tetra_permuter.1} parent=1 // pred_check
      _
    $region11: #{concat_tetra_permuter.1} parent=1 // pred_check_branch
      %39 = sbr.rel (0) target = $region13
    $region12: #{concat_tetra_permuter.1} parent=1 // pred_region
      %s41 = ssub.s32 2048, 2048
      %42 = vsyncadd [#allocation6], %s41
      %s43 = sshll.u32 [#allocation7], 4
      %s44 = int_to_ptr.vmem [resolvable:$true] %s43
      %49 = dma.hbm_to_vmem [thread:$0]  %s2, 2048, %s44, [#allocation6], 128, 128, 8
    $region13: #{concat_tetra_permuter.1} parent=1 // pred_fallthru
      _
    // Predicated region
    $region14: #{concat_tetra_permuter.1} parent=1 // pred_check
      _
    $region15: #{concat_tetra_permuter.1} parent=1 // pred_check_branch
      %51 = sbr.rel (0) target = $region17
    $region16: #{concat_tetra_permuter.1} parent=1 // pred_region
      %s53 = ssub.s32 2048, 2048
      %54 = vsyncadd [#allocation9], %s53
      %s55 = sshll.u32 [#allocation8], 4
      %s56 = int_to_ptr.vmem [resolvable:$true] %s55
      %61 = dma.hbm_to_vmem [thread:$0]  %s3, 2048, %s56, [#allocation9], 128, 128, 8
    $region17: #{concat_tetra_permuter.1} parent=1 // pred_fallthru
      _
    // Predicated region
    $region18: #{concat_tetra_permuter.1} parent=1 // pred_check
      _
    $region19: #{concat_tetra_permuter.1} parent=1 // pred_check_branch
      %63 = sbr.rel (0) target = $region21
    $region20: #{concat_tetra_permuter.1} parent=1 // pred_region
      %s65 = ssub.s32 64, 64
      %66 = vsyncadd [#allocation9], %s65
      %s68 = sshll.u32 [#allocation10], 4
      %s69 = int_to_ptr.vmem [resolvable:$true] %s68
      %71 = dma.hbm_to_vmem [thread:$0]  %s4, 64, %s69, [#allocation9]
    $region21: #{concat_tetra_permuter.1} parent=1 // pred_fallthru
      _
    // Predicated region
    $region22: #{concat_tetra_permuter.1} parent=1 // pred_check
      _
    $region23: #{concat_tetra_permuter.1} parent=1 // pred_check_branch
      %73 = sbr.rel (0) target = $region25
    $region24: #{concat_tetra_permuter.1} parent=1 // pred_region
      %74 = dma.done [#allocation3], 1024
    $region25: #{concat_tetra_permuter.1} parent=1 // pred_fallthru
      _
    // Predicated region
    $region26: #{concat_tetra_permuter.1} parent=1 // pred_check
      _
    $region27: #{concat_tetra_permuter.1} parent=1 // pred_check_branch
      %76 = sbr.rel (0) target = $region29
    $region28: #{concat_tetra_permuter.1} parent=1 // pred_region
      %77 = dma.done [#allocation6], 8192
    $region29: #{concat_tetra_permuter.1} parent=1 // pred_fallthru
      _
    // Predicated region
    $region30: #{concat_tetra_permuter.1} parent=1 // pred_check
      _
    $region31: #{concat_tetra_permuter.1} parent=1 // pred_check_branch
      %79 = sbr.rel (0) target = $region33
    $region32: #{concat_tetra_permuter.1} parent=1 // pred_region
      %80 = dma.done [#allocation6], 2048
    $region33: #{concat_tetra_permuter.1} parent=1 // pred_fallthru
      _
    // Predicated region
    $region34: #{concat_tetra_permuter.1} parent=1 // pred_check
      _
    $region35: #{concat_tetra_permuter.1} parent=1 // pred_check_branch
      %82 = sbr.rel (0) target = $region37
    $region36: #{concat_tetra_permuter.1} parent=1 // pred_region
      %83 = dma.done [#allocation9], 2048
    $region37: #{concat_tetra_permuter.1} parent=1 // pred_fallthru
      _
    // Predicated region
    $region38: #{concat_tetra_permuter.1} parent=1 // pred_check
      _
    $region39: #{concat_tetra_permuter.1} parent=1 // pred_check_branch
      %85 = sbr.rel (0) target = $region41
    $region40: #{concat_tetra_permuter.1} parent=1 // pred_region
      %86 = dma.done [#allocation9], 64
    $region41: #{concat_tetra_permuter.1} parent=1 // pred_fallthru
      _
    %v87 = vld [vmem:[#allocation2] sm:$0xff]
    %v88 = vld [vmem:[#allocation2 + $0x8] sm:$0xff]
    %v89 = vld [vmem:[#allocation2 + $0x10] sm:$0xff]
    %v90 = vld [vmem:[#allocation2 + $0x18] sm:$0xff]
    %v91 = vld [vmem:[#allocation2 + $0x20] sm:$0xff]
    %v92 = vld [vmem:[#allocation2 + $0x28] sm:$0xff]
    %v93 = vld [vmem:[#allocation2 + $0x30] sm:$0xff]
    %v94 = vld [vmem:[#allocation2 + $0x38] sm:$0xff]
    %v95 = vld [vmem:[#allocation5] sm:$0xff]
    %v96 = vld [vmem:[#allocation5 + $0x8] sm:$0xff]
    %v97 = vld [vmem:[#allocation5 + $0x10] sm:$0xff]
    %v98 = vld [vmem:[#allocation5 + $0x18] sm:$0xff]
    %v99 = vld [vmem:[#allocation5 + $0x20] sm:$0xff]
    %v100 = vld [vmem:[#allocation5 + $0x28] sm:$0xff]
    %v101 = vld [vmem:[#allocation5 + $0x30] sm:$0xff]
    %v102 = vld [vmem:[#allocation5 + $0x38] sm:$0xff]
    %v103 = vld [vmem:[#allocation5 + $0x40] sm:$0xff]
    %v104 = vld [vmem:[#allocation5 + $0x48] sm:$0xff]
    %v105 = vld [vmem:[#allocation5 + $0x50] sm:$0xff]
    %v106 = vld [vmem:[#allocation5 + $0x58] sm:$0xff]
    %v107 = vld [vmem:[#allocation5 + $0x60] sm:$0xff]
    %v108 = vld [vmem:[#allocation5 + $0x68] sm:$0xff]
    %v109 = vld [vmem:[#allocation5 + $0x70] sm:$0xff]
    %v110 = vld [vmem:[#allocation5 + $0x78] sm:$0xff]
    %v111 = vld [vmem:[#allocation5 + $0x80] sm:$0xff]
    %v112 = vld [vmem:[#allocation5 + $0x88] sm:$0xff]
    %v113 = vld [vmem:[#allocation5 + $0x90] sm:$0xff]
    %v114 = vld [vmem:[#allocation5 + $0x98] sm:$0xff]
    %v115 = vld [vmem:[#allocation5 + $0xa0] sm:$0xff]
    %v116 = vld [vmem:[#allocation5 + $0xa8] sm:$0xff]
    %v117 = vld [vmem:[#allocation5 + $0xb0] sm:$0xff]
    %v118 = vld [vmem:[#allocation5 + $0xb8] sm:$0xff]
    %v119 = vld [vmem:[#allocation5 + $0xc0] sm:$0xff]
    %v120 = vld [vmem:[#allocation5 + $0xc8] sm:$0xff]
    %v121 = vld [vmem:[#allocation5 + $0xd0] sm:$0xff]
    %v122 = vld [vmem:[#allocation5 + $0xd8] sm:$0xff]
    %v123 = vld [vmem:[#allocation5 + $0xe0] sm:$0xff]
    %v124 = vld [vmem:[#allocation5 + $0xe8] sm:$0xff]
    %v125 = vld [vmem:[#allocation5 + $0xf0] sm:$0xff]
    %v126 = vld [vmem:[#allocation5 + $0xf8] sm:$0xff]
    %v127 = vld [vmem:[#allocation5 + $0x100] sm:$0xff]
    %v128 = vld [vmem:[#allocation5 + $0x108] sm:$0xff]
    %v129 = vld [vmem:[#allocation5 + $0x110] sm:$0xff]
    %v130 = vld [vmem:[#allocation5 + $0x118] sm:$0xff]
    %v131 = vld [vmem:[#allocation5 + $0x120] sm:$0xff]
    %v132 = vld [vmem:[#allocation5 + $0x128] sm:$0xff]
    %v133 = vld [vmem:[#allocation5 + $0x130] sm:$0xff]
    %v134 = vld [vmem:[#allocation5 + $0x138] sm:$0xff]
    %v135 = vld [vmem:[#allocation5 + $0x140] sm:$0xff]
    %v136 = vld [vmem:[#allocation5 + $0x148] sm:$0xff]
    %v137 = vld [vmem:[#allocation5 + $0x150] sm:$0xff]
    %v138 = vld [vmem:[#allocation5 + $0x158] sm:$0xff]
    %v139 = vld [vmem:[#allocation5 + $0x160] sm:$0xff]
    %v140 = vld [vmem:[#allocation5 + $0x168] sm:$0xff]
    %v141 = vld [vmem:[#allocation5 + $0x170] sm:$0xff]
    %v142 = vld [vmem:[#allocation5 + $0x178] sm:$0xff]
    %v143 = vld [vmem:[#allocation5 + $0x180] sm:$0xff]
    %v144 = vld [vmem:[#allocation5 + $0x188] sm:$0xff]
    %v145 = vld [vmem:[#allocation5 + $0x190] sm:$0xff]
    %v146 = vld [vmem:[#allocation5 + $0x198] sm:$0xff]
    %v147 = vld [vmem:[#allocation5 + $0x1a0] sm:$0xff]
    %v148 = vld [vmem:[#allocation5 + $0x1a8] sm:$0xff]
    %v149 = vld [vmem:[#allocation5 + $0x1b0] sm:$0xff]
    %v150 = vld [vmem:[#allocation5 + $0x1b8] sm:$0xff]
    %v151 = vld [vmem:[#allocation5 + $0x1c0] sm:$0xff]
    %v152 = vld [vmem:[#allocation5 + $0x1c8] sm:$0xff]
    %v153 = vld [vmem:[#allocation5 + $0x1d0] sm:$0xff]
    %v154 = vld [vmem:[#allocation5 + $0x1d8] sm:$0xff]
    %v155 = vld [vmem:[#allocation5 + $0x1e0] sm:$0xff]
    %v156 = vld [vmem:[#allocation5 + $0x1e8] sm:$0xff]
    %v157 = vld [vmem:[#allocation5 + $0x1f0] sm:$0xff]
    %v158 = vld [vmem:[#allocation5 + $0x1f8] sm:$0xff]
    %159 = vmatprep.subr.mxu0 %v96
    %160 = vmatpush1.msra.mxu0 %v95
    %161 = vmatprep.subr.mxu0 %v100
    %162 = vmatpush1.msra.mxu0 %v99
    %163 = vmatprep.subr.mxu0 %v104
    %164 = vmatpush1.msra.mxu0 %v103
    %165 = vmatprep.subr.mxu0 %v108
    %166 = vmatpush1.msra.mxu0 %v107
    %167 = vmatprep.subr.mxu0 %v112
    %168 = vmatpush1.msra.mxu0 %v111
    %169 = vmatprep.subr.mxu0 %v116
    %170 = vmatpush1.msra.mxu0 %v115
    %171 = vmatprep.subr.mxu0 %v120
    %172 = vmatpush1.msra.mxu0 %v119
    %173 = vmatprep.subr.mxu0 %v124
    %174 = vmatpush1.msra.mxu0 %v123
    %175 = vmatprep.subr.mxu0 %v128
    %176 = vmatpush1.msra.mxu0 %v127
    %177 = vmatprep.subr.mxu0 %v132
    %178 = vmatpush1.msra.mxu0 %v131
    %179 = vmatprep.subr.mxu0 %v136
    %180 = vmatpush1.msra.mxu0 %v135
    %181 = vmatprep.subr.mxu0 %v140
    %182 = vmatpush1.msra.mxu0 %v139
    %183 = vmatprep.subr.mxu0 %v144
    %184 = vmatpush1.msra.mxu0 %v143
    %185 = vmatprep.subr.mxu0 %v148
    %186 = vmatpush1.msra.mxu0 %v147
    %187 = vmatprep.subr.mxu0 %v152
    %188 = vmatpush1.msra.mxu0 %v151
    %189 = vmatprep.subr.mxu0 %v156
    %190 = vmatpush1.msra.mxu0 %v155
    %191 = vmatprep.subr.mxu0 0.0
    %192 = vmatpush1.msra.mxu0 0.0
    %193 = vmatprep.subr.mxu0 0.0
    %194 = vmatpush1.msra.mxu0 0.0
    %195 = vmatprep.subr.mxu0 0.0
    %196 = vmatpush1.msra.mxu0 0.0
    %197 = vmatprep.subr.mxu0 0.0
    %198 = vmatpush1.msra.mxu0 0.0
    %199 = vmatprep.subr.mxu0 0.0
    %200 = vmatpush1.msra.mxu0 0.0
    %201 = vmatprep.subr.mxu0 0.0
    %202 = vmatpush1.msra.mxu0 0.0
    %203 = vmatprep.subr.mxu0 0.0
    %204 = vmatpush1.msra.mxu0 0.0
    %205 = vmatprep.subr.mxu0 0.0
    %206 = vmatpush1.msra.mxu0 0.0
    %207 = vmatprep.subr.mxu0 0.0
    %208 = vmatpush1.msra.mxu0 0.0
    %209 = vmatprep.subr.mxu0 0.0
    %210 = vmatpush1.msra.mxu0 0.0
    %211 = vmatprep.subr.mxu0 0.0
    %212 = vmatpush1.msra.mxu0 0.0
    %213 = vmatprep.subr.mxu0 0.0
    %214 = vmatpush1.msra.mxu0 0.0
    %215 = vmatprep.subr.mxu0 0.0
    %216 = vmatpush1.msra.mxu0 0.0
    %217 = vmatprep.subr.mxu0 0.0
    %218 = vmatpush1.msra.mxu0 0.0
    %219 = vmatprep.subr.mxu0 0.0
    %220 = vmatpush1.msra.mxu0 0.0
    %221 = vmatprep.subr.mxu0 0.0
    %222 = vmatpush1.msra.mxu0 0.0
    %223 = vmatprep.mubr.f32.mxu0 0.0
    %224 = vmatmul.mubr.f32.gmra.mrb[0].mxu0 %v87
    %v225 = vpop.f32.mrb[0].mxu0
    %v226 = vadd.f32 0.0, %v225
    %v227 = vpop.f32.mrb[0].mxu0
    %v228 = vadd.f32 0.0, %v227
    %229 = vmatprep.mubr.f32.mxu0 0.0
    %230 = vmatmul.mubr.f32.gmra.mrb[0].mxu0 %v88
    %v231 = vpop.f32.mrb[0].mxu0
    %v232 = vadd.f32 0.0, %v231
    %v233 = vpop.f32.mrb[0].mxu0
    %v234 = vadd.f32 0.0, %v233
    %235 = vmatprep.mubr.f32.mxu0 0.0
    %236 = vmatmul.mubr.f32.gmra.mrb[0].mxu0 %v89
    %v237 = vpop.f32.mrb[0].mxu0
    %v238 = vadd.f32 0.0, %v237
    %v239 = vpop.f32.mrb[0].mxu0
    %v240 = vadd.f32 0.0, %v239
    %241 = vmatprep.mubr.f32.mxu0 0.0
    %242 = vmatmul.mubr.f32.gmra.mrb[0].mxu0 %v90
    %v243 = vpop.f32.mrb[0].mxu0
    %v244 = vadd.f32 0.0, %v243
    %v245 = vpop.f32.mrb[0].mxu0
    %v246 = vadd.f32 0.0, %v245
    %247 = vmatprep.mubr.f32.mxu0 0.0
    %248 = vmatmul.mubr.f32.gmra.mrb[0].mxu0 %v91
    %v249 = vpop.f32.mrb[0].mxu0
    %v250 = vadd.f32 0.0, %v249
    %v251 = vpop.f32.mrb[0].mxu0
    %v252 = vadd.f32 0.0, %v251
    %253 = vmatprep.mubr.f32.mxu0 0.0
    %254 = vmatmul.mubr.f32.gmra.mrb[0].mxu0 %v92
    %v255 = vpop.f32.mrb[0].mxu0
    %v256 = vadd.f32 0.0, %v255
    %v257 = vpop.f32.mrb[0].mxu0
    %v258 = vadd.f32 0.0, %v257
    %259 = vmatprep.mubr.f32.mxu0 0.0
    %260 = vmatmul.mubr.f32.gmra.mrb[0].mxu0 %v93
    %v261 = vpop.f32.mrb[0].mxu0
    %v262 = vadd.f32 0.0, %v261
    %v263 = vpop.f32.mrb[0].mxu0
    %v264 = vadd.f32 0.0, %v263
    %265 = vmatprep.mubr.f32.mxu0 0.0
    %266 = vmatmul.mubr.f32.gmra.mrb[0].mxu0 %v94
    %v267 = vpop.f32.mrb[0].mxu0
    %v268 = vadd.f32 0.0, %v267
    %v269 = vpop.f32.mrb[0].mxu0
    %v270 = vadd.f32 0.0, %v269
    %271 = vdwg.mxu0
    %272 = vmatprep.subr.mxu0 %v98
    %273 = vmatpush1.msra.mxu0 %v97
    %274 = vmatprep.subr.mxu0 %v102
    %275 = vmatpush1.msra.mxu0 %v101
    %276 = vmatprep.subr.mxu0 %v106
    %277 = vmatpush1.msra.mxu0 %v105
    %278 = vmatprep.subr.mxu0 %v110
    %279 = vmatpush1.msra.mxu0 %v109
    %280 = vmatprep.subr.mxu0 %v114
    %281 = vmatpush1.msra.mxu0 %v113
    %282 = vmatprep.subr.mxu0 %v118
    %283 = vmatpush1.msra.mxu0 %v117
    %284 = vmatprep.subr.mxu0 %v122
    %285 = vmatpush1.msra.mxu0 %v121
    %286 = vmatprep.subr.mxu0 %v126
    %287 = vmatpush1.msra.mxu0 %v125
    %288 = vmatprep.subr.mxu0 %v130
    %289 = vmatpush1.msra.mxu0 %v129
    %290 = vmatprep.subr.mxu0 %v134
    %291 = vmatpush1.msra.mxu0 %v133
    %292 = vmatprep.subr.mxu0 %v138
    %293 = vmatpush1.msra.mxu0 %v137
    %294 = vmatprep.subr.mxu0 %v142
    %295 = vmatpush1.msra.mxu0 %v141
    %296 = vmatprep.subr.mxu0 %v146
    %297 = vmatpush1.msra.mxu0 %v145
    %298 = vmatprep.subr.mxu0 %v150
    %299 = vmatpush1.msra.mxu0 %v149
    %300 = vmatprep.subr.mxu0 %v154
    %301 = vmatpush1.msra.mxu0 %v153
    %302 = vmatprep.subr.mxu0 %v158
    %303 = vmatpush1.msra.mxu0 %v157
    %304 = vmatprep.subr.mxu0 0.0
    %305 = vmatpush1.msra.mxu0 0.0
    %306 = vmatprep.subr.mxu0 0.0
    %307 = vmatpush1.msra.mxu0 0.0
    %308 = vmatprep.subr.mxu0 0.0
    %309 = vmatpush1.msra.mxu0 0.0
    %310 = vmatprep.subr.mxu0 0.0
    %311 = vmatpush1.msra.mxu0 0.0
    %312 = vmatprep.subr.mxu0 0.0
    %313 = vmatpush1.msra.mxu0 0.0
    %314 = vmatprep.subr.mxu0 0.0
    %315 = vmatpush1.msra.mxu0 0.0
    %316 = vmatprep.subr.mxu0 0.0
    %317 = vmatpush1.msra.mxu0 0.0
    %318 = vmatprep.subr.mxu0 0.0
    %319 = vmatpush1.msra.mxu0 0.0
    %320 = vmatprep.subr.mxu0 0.0
    %321 = vmatpush1.msra.mxu0 0.0
    %322 = vmatprep.subr.mxu0 0.0
    %323 = vmatpush1.msra.mxu0 0.0
    %324 = vmatprep.subr.mxu0 0.0
    %325 = vmatpush1.msra.mxu0 0.0
    %326 = vmatprep.subr.mxu0 0.0
    %327 = vmatpush1.msra.mxu0 0.0
    %328 = vmatprep.subr.mxu0 0.0
    %329 = vmatpush1.msra.mxu0 0.0
    %330 = vmatprep.subr.mxu0 0.0
    %331 = vmatpush1.msra.mxu0 0.0
    %332 = vmatprep.subr.mxu0 0.0
    %333 = vmatpush1.msra.mxu0 0.0
    %334 = vmatprep.subr.mxu0 0.0
    %335 = vmatpush1.msra.mxu0 0.0
    %336 = vmatprep.mubr.f32.mxu0 0.0
    %337 = vmatmul.mubr.f32.gmra.mrb[0].mxu0 %v87
    %v338 = vpop.f32.mrb[0].mxu0
    %v339 = vadd.f32 0.0, %v338
    %v340 = vpop.f32.mrb[0].mxu0
    %v341 = vadd.f32 0.0, %v340
    %342 = vmatprep.mubr.f32.mxu0 0.0
    %343 = vmatmul.mubr.f32.gmra.mrb[0].mxu0 %v88
    %v344 = vpop.f32.mrb[0].mxu0
    %v345 = vadd.f32 0.0, %v344
    %v346 = vpop.f32.mrb[0].mxu0
    %v347 = vadd.f32 0.0, %v346
    %348 = vmatprep.mubr.f32.mxu0 0.0
    %349 = vmatmul.mubr.f32.gmra.mrb[0].mxu0 %v89
    %v350 = vpop.f32.mrb[0].mxu0
    %v351 = vadd.f32 0.0, %v350
    %v352 = vpop.f32.mrb[0].mxu0
    %v353 = vadd.f32 0.0, %v352
    %354 = vmatprep.mubr.f32.mxu0 0.0
    %355 = vmatmul.mubr.f32.gmra.mrb[0].mxu0 %v90
    %v356 = vpop.f32.mrb[0].mxu0
    %v357 = vadd.f32 0.0, %v356
    %v358 = vpop.f32.mrb[0].mxu0
    %v359 = vadd.f32 0.0, %v358
    %360 = vmatprep.mubr.f32.mxu0 0.0
    %361 = vmatmul.mubr.f32.gmra.mrb[0].mxu0 %v91
    %v362 = vpop.f32.mrb[0].mxu0
    %v363 = vadd.f32 0.0, %v362
    %v364 = vpop.f32.mrb[0].mxu0
    %v365 = vadd.f32 0.0, %v364
    %366 = vmatprep.mubr.f32.mxu0 0.0
    %367 = vmatmul.mubr.f32.gmra.mrb[0].mxu0 %v92
    %v368 = vpop.f32.mrb[0].mxu0
    %v369 = vadd.f32 0.0, %v368
    %v370 = vpop.f32.mrb[0].mxu0
    %v371 = vadd.f32 0.0, %v370
    %372 = vmatprep.mubr.f32.mxu0 0.0
    %373 = vmatmul.mubr.f32.gmra.mrb[0].mxu0 %v93
    %v374 = vpop.f32.mrb[0].mxu0
    %v375 = vadd.f32 0.0, %v374
    %v376 = vpop.f32.mrb[0].mxu0
    %v377 = vadd.f32 0.0, %v376
    %378 = vmatprep.mubr.f32.mxu0 0.0
    %379 = vmatmul.mubr.f32.gmra.mrb[0].mxu0 %v94
    %v380 = vpop.f32.mrb[0].mxu0
    %v381 = vadd.f32 0.0, %v380
    %v382 = vpop.f32.mrb[0].mxu0
    %v383 = vadd.f32 0.0, %v382
    %384 = vdwg.mxu0
    %v385 = vld [vmem:[#allocation10] sm:$0x1]
    %v386 = vlaneseq
    %v387 = vshrl.u32 %v386, 7
    %v388 = vsub.s32 0, %v387
    %v389 = vrot.slane %v385, %v388
    %v390 = vadd.f32 %v226, %v389
    %v391 = vadd.f32 %v232, %v389
    %v392 = vadd.f32 %v238, %v389
    %v393 = vadd.f32 %v244, %v389
    %v394 = vadd.f32 %v250, %v389
    %v395 = vadd.f32 %v256, %v389
    %v396 = vadd.f32 %v262, %v389
    %v397 = vadd.f32 %v268, %v389
    %v398 = vadd.f32 %v390, %v240
    %v399 = vadd.f32 %v391, %v246
    %v400 = vadd.f32 %v398, %v363
    %v401 = vadd.f32 %v399, %v369
    %v402 = vadd.f32 %v400, %v377
    %v403 = vadd.f32 %v401, %v383
    %v404 = vmax.f32 %v402, 0.0
    %v405 = vmax.f32 %v403, 0.0
    %v406 = vadd.f32 %v390, %v252
    %v407 = vadd.f32 %v391, %v258
    %v408 = vadd.f32 %v406, %v375
    %v409 = vadd.f32 %v407, %v381
    %v410 = vadd.f32 %v408, %v353
    %v411 = vadd.f32 %v409, %v359
    %v412 = vmax.f32 %v410, 0.0
    %v413 = vmax.f32 %v411, 0.0
    %v414 = vadd.f32 %v404, %v412
    %v415 = vadd.f32 %v405, %v413
    %v416 = vadd.f32 %v390, %v264
    %v417 = vadd.f32 %v391, %v270
    %v418 = vadd.f32 %v416, %v351
    %v419 = vadd.f32 %v417, %v357
    %v420 = vadd.f32 %v418, %v365
    %v421 = vadd.f32 %v419, %v371
    %v422 = vmax.f32 %v420, 0.0
    %v423 = vmax.f32 %v421, 0.0
    %v424 = vadd.f32 %v414, %v422
    %v425 = vadd.f32 %v415, %v423
    %v426 = vadd.f32 %v392, %v228
    %v427 = vadd.f32 %v393, %v234
    %v428 = vadd.f32 %v426, %v375
    %v429 = vadd.f32 %v427, %v381
    %v430 = vadd.f32 %v428, %v365
    %v431 = vadd.f32 %v429, %v371
    %v432 = vmax.f32 %v430, 0.0
    %v433 = vmax.f32 %v431, 0.0
    %v434 = vadd.f32 %v424, %v432
    %v435 = vadd.f32 %v425, %v433
    %v436 = vadd.f32 %v392, %v252
    %v437 = vadd.f32 %v393, %v258
    %v438 = vadd.f32 %v436, %v339
    %v439 = vadd.f32 %v437, %v345
    %v440 = vadd.f32 %v438, %v377
    %v441 = vadd.f32 %v439, %v383
    %v442 = vmax.f32 %v440, 0.0
    %v443 = vmax.f32 %v441, 0.0
    %v444 = vadd.f32 %v434, %v442
    %v445 = vadd.f32 %v435, %v443
    %v446 = vadd.f32 %v392, %v264
    %v447 = vadd.f32 %v393, %v270
    %v448 = vadd.f32 %v446, %v363
    %v449 = vadd.f32 %v447, %v369
    %v450 = vadd.f32 %v448, %v341
    %v451 = vadd.f32 %v449, %v347
    %v452 = vmax.f32 %v450, 0.0
    %v453 = vmax.f32 %v451, 0.0
    %v454 = vadd.f32 %v444, %v452
    %v455 = vadd.f32 %v445, %v453
    %v456 = vadd.f32 %v394, %v228
    %v457 = vadd.f32 %v395, %v234
    %v458 = vadd.f32 %v456, %v351
    %v459 = vadd.f32 %v457, %v357
    %v460 = vadd.f32 %v458, %v377
    %v461 = vadd.f32 %v459, %v383
    %v462 = vmax.f32 %v460, 0.0
    %v463 = vmax.f32 %v461, 0.0
    %v464 = vadd.f32 %v454, %v462
    %v465 = vadd.f32 %v455, %v463
    %v466 = vadd.f32 %v394, %v240
    %v467 = vadd.f32 %v395, %v246
    %v468 = vadd.f32 %v466, %v375
    %v469 = vadd.f32 %v467, %v381
    %v470 = vadd.f32 %v468, %v341
    %v471 = vadd.f32 %v469, %v347
    %v472 = vmax.f32 %v470, 0.0
    %v473 = vmax.f32 %v471, 0.0
    %v474 = vadd.f32 %v464, %v472
    %v475 = vadd.f32 %v465, %v473
    %v476 = vadd.f32 %v394, %v264
    %v477 = vadd.f32 %v395, %v270
    %v478 = vadd.f32 %v476, %v339
    %v479 = vadd.f32 %v477, %v345
    %v480 = vadd.f32 %v478, %v353
    %v481 = vadd.f32 %v479, %v359
    %v482 = vmax.f32 %v480, 0.0
    %v483 = vmax.f32 %v481, 0.0
    %v484 = vadd.f32 %v474, %v482
    %v485 = vadd.f32 %v475, %v483
    %v486 = vadd.f32 %v396, %v228
    %v487 = vadd.f32 %v397, %v234
    %v488 = vadd.f32 %v486, %v363
    %v489 = vadd.f32 %v487, %v369
    %v490 = vadd.f32 %v488, %v353
    %v491 = vadd.f32 %v489, %v359
    %v492 = vmax.f32 %v490, 0.0
    %v493 = vmax.f32 %v491, 0.0
    %v494 = vadd.f32 %v484, %v492
    %v495 = vadd.f32 %v485, %v493
    %v496 = vadd.f32 %v396, %v240
    %v497 = vadd.f32 %v397, %v246
    %v498 = vadd.f32 %v496, %v339
    %v499 = vadd.f32 %v497, %v345
    %v500 = vadd.f32 %v498, %v365
    %v501 = vadd.f32 %v499, %v371
    %v502 = vmax.f32 %v500, 0.0
    %v503 = vmax.f32 %v501, 0.0
    %v504 = vadd.f32 %v494, %v502
    %v505 = vadd.f32 %v495, %v503
    %v506 = vadd.f32 %v396, %v252
    %v507 = vadd.f32 %v397, %v258
    %v508 = vadd.f32 %v506, %v351
    %v509 = vadd.f32 %v507, %v357
    %v510 = vadd.f32 %v508, %v341
    %v511 = vadd.f32 %v509, %v347
    %v512 = vmax.f32 %v510, 0.0
    %v513 = vmax.f32 %v511, 0.0
    %v514 = vadd.f32 %v504, %v512
    %v515 = vadd.f32 %v505, %v513
    %v516 = vmul.f32 %v514, 0.33333334
    %v517 = vmul.f32 %v515, 0.33333334
    %v518 = vld [vmem:[#allocation7] sm:$0xff]
    %v519 = vld [vmem:[#allocation7 + $0x8] sm:$0xff]
    %v520 = vld [vmem:[#allocation7 + $0x10] sm:$0xff]
    %v521 = vld [vmem:[#allocation7 + $0x18] sm:$0xff]
    %v522 = vld [vmem:[#allocation7 + $0x20] sm:$0xff]
    %v523 = vld [vmem:[#allocation7 + $0x28] sm:$0xff]
    %v524 = vld [vmem:[#allocation7 + $0x30] sm:$0xff]
    %v525 = vld [vmem:[#allocation7 + $0x38] sm:$0xff]
    %v526 = vld [vmem:[#allocation7 + $0x40] sm:$0xff]
    %v527 = vld [vmem:[#allocation7 + $0x48] sm:$0xff]
    %v528 = vld [vmem:[#allocation7 + $0x50] sm:$0xff]
    %v529 = vld [vmem:[#allocation7 + $0x58] sm:$0xff]
    %v530 = vld [vmem:[#allocation7 + $0x60] sm:$0xff]
    %v531 = vld [vmem:[#allocation7 + $0x68] sm:$0xff]
    %v532 = vld [vmem:[#allocation7 + $0x70] sm:$0xff]
    %v533 = vld [vmem:[#allocation7 + $0x78] sm:$0xff]
    %v534 = vld [vmem:[#allocation10 + $0x1] sm:$0x1]
    %v535 = vlaneseq
    %v536 = vshrl.u32 %v535, 7
    %v537 = vsub.s32 0, %v536
    %v538 = vrot.slane %v534, %v537
    %539 = vmatprep.subr.mxu0 0.0
    %540 = vmatpush1.msra.mxu0 %v518
    %541 = vmatprep.subr.mxu0 0.0
    %542 = vmatpush1.msra.mxu0 %v519
    %543 = vmatprep.subr.mxu0 0.0
    %544 = vmatpush1.msra.mxu0 %v520
    %545 = vmatprep.subr.mxu0 0.0
    %546 = vmatpush1.msra.mxu0 %v521
    %547 = vmatprep.subr.mxu0 0.0
    %548 = vmatpush1.msra.mxu0 %v522
    %549 = vmatprep.subr.mxu0 0.0
    %550 = vmatpush1.msra.mxu0 %v523
    %551 = vmatprep.subr.mxu0 0.0
    %552 = vmatpush1.msra.mxu0 %v524
    %553 = vmatprep.subr.mxu0 0.0
    %554 = vmatpush1.msra.mxu0 %v525
    %555 = vmatprep.subr.mxu0 0.0
    %556 = vmatpush1.msra.mxu0 %v526
    %557 = vmatprep.subr.mxu0 0.0
    %558 = vmatpush1.msra.mxu0 %v527
    %559 = vmatprep.subr.mxu0 0.0
    %560 = vmatpush1.msra.mxu0 %v528
    %561 = vmatprep.subr.mxu0 0.0
    %562 = vmatpush1.msra.mxu0 %v529
    %563 = vmatprep.subr.mxu0 0.0
    %564 = vmatpush1.msra.mxu0 %v530
    %565 = vmatprep.subr.mxu0 0.0
    %566 = vmatpush1.msra.mxu0 %v531
    %567 = vmatprep.subr.mxu0 0.0
    %568 = vmatpush1.msra.mxu0 %v532
    %569 = vmatprep.subr.mxu0 0.0
    %570 = vmatpush1.msra.mxu0 %v533
    %571 = vmatprep.subr.mxu0 0.0
    %572 = vmatpush1.msra.mxu0 0.0
    %573 = vmatprep.subr.mxu0 0.0
    %574 = vmatpush1.msra.mxu0 0.0
    %575 = vmatprep.subr.mxu0 0.0
    %576 = vmatpush1.msra.mxu0 0.0
    %577 = vmatprep.subr.mxu0 0.0
    %578 = vmatpush1.msra.mxu0 0.0
    %579 = vmatprep.subr.mxu0 0.0
    %580 = vmatpush1.msra.mxu0 0.0
    %581 = vmatprep.subr.mxu0 0.0
    %582 = vmatpush1.msra.mxu0 0.0
    %583 = vmatprep.subr.mxu0 0.0
    %584 = vmatpush1.msra.mxu0 0.0
    %585 = vmatprep.subr.mxu0 0.0
    %586 = vmatpush1.msra.mxu0 0.0
    %587 = vmatprep.subr.mxu0 0.0
    %588 = vmatpush1.msra.mxu0 0.0
    %589 = vmatprep.subr.mxu0 0.0
    %590 = vmatpush1.msra.mxu0 0.0
    %591 = vmatprep.subr.mxu0 0.0
    %592 = vmatpush1.msra.mxu0 0.0
    %593 = vmatprep.subr.mxu0 0.0
    %594 = vmatpush1.msra.mxu0 0.0
    %595 = vmatprep.subr.mxu0 0.0
    %596 = vmatpush1.msra.mxu0 0.0
    %597 = vmatprep.subr.mxu0 0.0
    %598 = vmatpush1.msra.mxu0 0.0
    %599 = vmatprep.subr.mxu0 0.0
    %600 = vmatpush1.msra.mxu0 0.0
    %601 = vmatprep.subr.mxu0 0.0
    %602 = vmatpush1.msra.mxu0 0.0
    %603 = vmatprep.mubr.f32.mxu0 0.0
    %604 = vmatmul.mubr.f32.gmra.mrb[0].mxu0 %v516
    %v605 = vpop.f32.mrb[0].mxu0
    %v606 = vadd.f32 %v538, %v605
    %v607 = vpop.f32.mrb[0].mxu0
    %608 = vmatprep.mubr.f32.mxu0 0.0
    %609 = vmatmul.mubr.f32.gmra.mrb[0].mxu0 %v517
    %v610 = vpop.f32.mrb[0].mxu0
    %v611 = vadd.f32 %v538, %v610
    %v612 = vpop.f32.mrb[0].mxu0
    %613 = vdwg.mxu0
    %v614 = vmax.f32 %v606, 0.0
    %v615 = vmax.f32 %v611, 0.0
    %v616 = vld [vmem:[#allocation8] sm:$0xff]
    %v617 = vld [vmem:[#allocation8 + $0x8] sm:$0xff]
    %v618 = vld [vmem:[#allocation8 + $0x10] sm:$0xff]
    %v619 = vld [vmem:[#allocation8 + $0x18] sm:$0xff]
    %v620 = vld [vmem:[#allocation8 + $0x20] sm:$0xff]
    %v621 = vld [vmem:[#allocation8 + $0x28] sm:$0xff]
    %v622 = vld [vmem:[#allocation8 + $0x30] sm:$0xff]
    %v623 = vld [vmem:[#allocation8 + $0x38] sm:$0xff]
    %v624 = vld [vmem:[#allocation8 + $0x40] sm:$0xff]
    %v625 = vld [vmem:[#allocation8 + $0x48] sm:$0xff]
    %v626 = vld [vmem:[#allocation8 + $0x50] sm:$0xff]
    %v627 = vld [vmem:[#allocation8 + $0x58] sm:$0xff]
    %v628 = vld [vmem:[#allocation8 + $0x60] sm:$0xff]
    %v629 = vld [vmem:[#allocation8 + $0x68] sm:$0xff]
    %v630 = vld [vmem:[#allocation8 + $0x70] sm:$0xff]
    %v631 = vld [vmem:[#allocation8 + $0x78] sm:$0xff]
    %v632 = vld [vmem:[#allocation10 + $0x2] sm:$0x1]
    %v633 = vlaneseq
    %v634 = vshrl.u32 %v633, 7
    %v635 = vsub.s32 0, %v634
    %v636 = vrot.slane %v632, %v635
    %637 = vmatprep.subr.mxu0 0.0
    %638 = vmatpush1.msra.mxu0 %v616
    %639 = vmatprep.subr.mxu0 0.0
    %640 = vmatpush1.msra.mxu0 %v617
    %641 = vmatprep.subr.mxu0 0.0
    %642 = vmatpush1.msra.mxu0 %v618
    %643 = vmatprep.subr.mxu0 0.0
    %644 = vmatpush1.msra.mxu0 %v619
    %645 = vmatprep.subr.mxu0 0.0
    %646 = vmatpush1.msra.mxu0 %v620
    %647 = vmatprep.subr.mxu0 0.0
    %648 = vmatpush1.msra.mxu0 %v621
    %649 = vmatprep.subr.mxu0 0.0
    %650 = vmatpush1.msra.mxu0 %v622
    %651 = vmatprep.subr.mxu0 0.0
    %652 = vmatpush1.msra.mxu0 %v623
    %653 = vmatprep.subr.mxu0 0.0
    %654 = vmatpush1.msra.mxu0 %v624
    %655 = vmatprep.subr.mxu0 0.0
    %656 = vmatpush1.msra.mxu0 %v625
    %657 = vmatprep.subr.mxu0 0.0
    %658 = vmatpush1.msra.mxu0 %v626
    %659 = vmatprep.subr.mxu0 0.0
    %660 = vmatpush1.msra.mxu0 %v627
    %661 = vmatprep.subr.mxu0 0.0
    %662 = vmatpush1.msra.mxu0 %v628
    %663 = vmatprep.subr.mxu0 0.0
    %664 = vmatpush1.msra.mxu0 %v629
    %665 = vmatprep.subr.mxu0 0.0
    %666 = vmatpush1.msra.mxu0 %v630
    %667 = vmatprep.subr.mxu0 0.0
    %668 = vmatpush1.msra.mxu0 %v631
    %669 = vmatprep.subr.mxu0 0.0
    %670 = vmatpush1.msra.mxu0 0.0
    %671 = vmatprep.subr.mxu0 0.0
    %672 = vmatpush1.msra.mxu0 0.0
    %673 = vmatprep.subr.mxu0 0.0
    %674 = vmatpush1.msra.mxu0 0.0
    %675 = vmatprep.subr.mxu0 0.0
    %676 = vmatpush1.msra.mxu0 0.0
    %677 = vmatprep.subr.mxu0 0.0
    %678 = vmatpush1.msra.mxu0 0.0
    %679 = vmatprep.subr.mxu0 0.0
    %680 = vmatpush1.msra.mxu0 0.0
    %681 = vmatprep.subr.mxu0 0.0
    %682 = vmatpush1.msra.mxu0 0.0
    %683 = vmatprep.subr.mxu0 0.0
    %684 = vmatpush1.msra.mxu0 0.0
    %685 = vmatprep.subr.mxu0 0.0
    %686 = vmatpush1.msra.mxu0 0.0
    %687 = vmatprep.subr.mxu0 0.0
    %688 = vmatpush1.msra.mxu0 0.0
    %689 = vmatprep.subr.mxu0 0.0
    %690 = vmatpush1.msra.mxu0 0.0
    %691 = vmatprep.subr.mxu0 0.0
    %692 = vmatpush1.msra.mxu0 0.0
    %693 = vmatprep.subr.mxu0 0.0
    %694 = vmatpush1.msra.mxu0 0.0
    %695 = vmatprep.subr.mxu0 0.0
    %696 = vmatpush1.msra.mxu0 0.0
    %697 = vmatprep.subr.mxu0 0.0
    %698 = vmatpush1.msra.mxu0 0.0
    %699 = vmatprep.subr.mxu0 0.0
    %700 = vmatpush1.msra.mxu0 0.0
    %701 = vmatprep.mubr.f32.mxu0 0.0
    %702 = vmatmul.mubr.f32.gmra.mrb[0].mxu0 %v614
    %v703 = vpop.f32.mrb[0].mxu0
    %v704 = vadd.f32 %v636, %v703
    %v705 = vpop.f32.mrb[0].mxu0
    %706 = vmatprep.mubr.f32.mxu0 0.0
    %707 = vmatmul.mubr.f32.gmra.mrb[0].mxu0 %v615
    %v708 = vpop.f32.mrb[0].mxu0
    %v709 = vadd.f32 %v636, %v708
    %v710 = vpop.f32.mrb[0].mxu0
    %711 = vdwg.mxu0
    %712 = vst [vmem:[#allocation11] sm:$0xff] %v704
    %713 = vst [vmem:[#allocation11 + $0x8] sm:$0xff] %v709
    // Predicated region
    $region42: #{concat_tetra_permuter.1} parent=1 // pred_check
      _
    $region43: #{concat_tetra_permuter.1} parent=1 // pred_check_branch
      %715 = sbr.rel (0) target = $region45
    $region44: #{concat_tetra_permuter.1} parent=1 // pred_region
      %s717 = ssub.s32 256, 256
      %718 = vsyncadd [#allocation4], %s717
      %s719 = sshll.u32 [#allocation11], 4
      %s720 = int_to_ptr.vmem [resolvable:$true] %s719
      %725 = dma.vmem_to_hbm [thread:$0]  %s720, 256, %s5, [#allocation4], 128, 128, 8
    $region45: #{concat_tetra_permuter.1} parent=1 // pred_fallthru
      _
    // Predicated region
    $region46: #{concat_tetra_permuter.1} parent=1 // pred_check
      _
    $region47: #{concat_tetra_permuter.1} parent=1 // pred_check_branch
      %727 = sbr.rel (0) target = $region49
    $region48: #{concat_tetra_permuter.1} parent=1 // pred_region
      %728 = dma.done [#allocation4], 256
    $region49: #{concat_tetra_permuter.1} parent=1 // pred_fallthru
      _
    %729 = vsyncpa [#allocation3], 1
    %730 = vsyncpa [#allocation6], 1
    %731 = vsyncpa [#allocation9], 1
    %732 = vsyncpa [#allocation4], 1

</llo_original>
